<compile_context>
chip_gen: v7x
topology: tpu7x:2x2x1
jax: 0.10.0
libtpu: 0.0.40
codegen_flags: <defaults>
</compile_context>

<pallas_src>
import functools
import math

import jax
import jax.numpy as jnp
from jax.experimental import pallas as pl
from jax.experimental.pallas import tpu as pltpu

LN_EPS = 1e-6


# ---------------------------------------------------------------------------
# Pallas kernel: fused Linear + ReLU + positional-encoding add + LayerNorm
# ---------------------------------------------------------------------------
def venc_kernel(x_ref, w_ref, b_ref, pe_ref, g_ref, beta_ref, o_ref, *, d_real):
    # x_ref   : (1, TM, Din)   tile of sequence rows for one batch element
    # w_ref   : (Din, Dpad)    full projection weight (grid-invariant, resident)
    # b_ref   : (1, Dpad)      projection bias (zero on padded lanes)
    # pe_ref  : (TM, Dpad)     positional-encoding rows for this seq tile
    # g_ref / beta_ref : (1, Dpad)  LayerNorm affine params (zero on padded lanes)
    # o_ref   : (1, TM, Dpad)
    y = jnp.dot(x_ref[0], w_ref[...], preferred_element_type=jnp.float32)
    y = jnp.maximum(y + b_ref[...], 0.0)          # Linear bias + ReLU
    y = y + pe_ref[...]                           # vid_position (sinusoidal PE)

    # Single-pass moments over the *real* feature width.  Padded feature columns
    # are exactly zero (zero W columns / bias / PE), so they do not perturb the
    # sums; we just divide by the real width.
    s1 = jnp.sum(y, axis=-1, keepdims=True)
    s2 = jnp.sum(y * y, axis=-1, keepdims=True)
    mean = s1 * (1.0 / d_real)
    var = jnp.maximum(s2 - s1 * mean, 0.0) * (1.0 / (d_real - 1))  # unbiased (N-1)
    std = jnp.sqrt(var)

    denom = std + LN_EPS
    inv = pl.reciprocal(denom, approx=True)       # EUP slot (otherwise idle)
    inv = inv * (2.0 - denom * inv)               # one Newton step -> ~f32 accuracy

    out = g_ref[...] * (y - mean) * inv + beta_ref[...]
    o_ref[0] = out.astype(o_ref.dtype)


# ---------------------------------------------------------------------------
# Wrapper: padding, tiling choice, pallas_call
# ---------------------------------------------------------------------------
def _round_up(x, m):
    return ((x + m - 1) // m) * m


def _pad_axis(x, target, axis):
    pad = target - x.shape[axis]
    if pad == 0:
        return x
    widths = [(0, 0)] * x.ndim
    widths[axis] = (0, pad)
    return jnp.pad(x, widths)


def _choose_tiling(seq, d_in, d_pad, *, max_tile=512, vmem_budget=20 * 1024 * 1024):
    """Pick the largest row tile that fits a conservative VMEM budget."""
    seq8 = _round_up(seq, 8)
    # double-buffered x / pe / out rows (f32)
    per_row = 4 * 2 * (d_in + 2 * d_pad)
    # resident (double-buffered) grid-invariant params: W, bias, gamma, beta
    fixed = 4 * 2 * (d_in * d_pad + 3 * d_pad)
    cap = max(8, ((vmem_budget - fixed) // per_row) // 8 * 8)
    tile_cap = max(8, min(max_tile, cap, seq8))
    n_s = pl.cdiv(seq8, tile_cap)
    tile_m = _round_up(pl.cdiv(seq8, n_s), 8)
    seq_pad = n_s * tile_m
    return tile_m, seq_pad, n_s


def sinusoidal_pe(seq_len, d_model):
    pos = jnp.arange(seq_len, dtype=jnp.float32)[:, None]
    div = jnp.exp(jnp.arange(0, d_model, 2, dtype=jnp.float32)
                  * -(math.log(10000.0) / d_model))
    pe = jnp.zeros((seq_len, d_model), jnp.float32)
    pe = pe.at[:, 0::2].set(jnp.sin(pos * div))
    pe = pe.at[:, 1::2].set(jnp.cos(pos * div))
    return pe


def encode_branch(x, w, bias, gamma, beta, *, max_tile=512):
    """Fused branch over x: (B, S, Din) -> (B, S, Dout)."""
    B, seq, d_in = x.shape
    d_out = w.shape[1]
    d_pad = _round_up(d_out, 128)                     # lane-dense output
    tile_m, seq_pad, n_s = _choose_tiling(seq, d_in, d_pad, max_tile=max_tile)

    xp = _pad_axis(x, seq_pad, 1)
    wp = _pad_axis(w, d_pad, 1)
    bp = _pad_axis(bias.reshape(1, -1), d_pad, 1)
    gp = _pad_axis(gamma.reshape(1, -1), d_pad, 1)
    betap = _pad_axis(beta.reshape(1, -1), d_pad, 1)
    pe = _pad_axis(sinusoidal_pe(seq_pad, d_out), d_pad, 1)   # untiled (no B repeat)

    kernel = functools.partial(venc_kernel, d_real=d_out)

    yp = pl.pallas_call(
        kernel,
        out_shape=jax.ShapeDtypeStruct((B, seq_pad, d_pad), jnp.float32),
        grid_spec=pltpu.PrefetchScalarGridSpec(
            num_scalar_prefetch=0,
            # seq tiles outer, batch inner: the PE block index only changes when
            # the seq tile changes, so it is not re-streamed per batch element.
            grid=(n_s, B),
            in_specs=[
                pl.BlockSpec((1, tile_m, d_in), lambda s, b: (b, s, 0)),   # x
                pl.BlockSpec((d_in, d_pad), lambda s, b: (0, 0)),          # W
                pl.BlockSpec((1, d_pad), lambda s, b: (0, 0)),             # bias
                pl.BlockSpec((tile_m, d_pad), lambda s, b: (s, 0)),        # PE
                pl.BlockSpec((1, d_pad), lambda s, b: (0, 0)),             # gamma
                pl.BlockSpec((1, d_pad), lambda s, b: (0, 0)),             # beta
            ],
            out_specs=pl.BlockSpec((1, tile_m, d_pad), lambda s, b: (b, s, 0)),
        ),
        compiler_params=pltpu.CompilerParams(
            dimension_semantics=("parallel", "parallel"),
            vmem_limit_bytes=32 * 1024 * 1024,
        ),
    )(xp, wp, bp, pe, gp, betap)

    # Strip seq / feature padding (plain JAX slice).
    return yp[:, :seq, :d_out]


# ---------------------------------------------------------------------------
# Pure-JAX reference (PyTorch semantics) for the correctness check
# ---------------------------------------------------------------------------
def ref_branch(x_tokens, w, b, pe_tokens, gamma, beta):
    y = jnp.maximum(x_tokens @ w + b, 0.0) + pe_tokens
    mean = y.mean(-1, keepdims=True)
    std = jnp.sqrt(((y - mean) ** 2).sum(-1, keepdims=True) / (y.shape[-1] - 1))
    return gamma * (y - mean) / (std + LN_EPS) + beta


def vid_encoder8_forward(fts, audio_fts, params):
    """fts: (B, T, R, Dv)  audio_fts: (B, Sa, Da)  ->  dict like the PyTorch module."""
    size = params["v_w"].shape[1]
    out = {}

    # --- video branch (v_N > 0): fts.view(B, T*R, size) gets the positional enc ---
    B, T, R, Dv = fts.shape
    xv = fts.reshape(B, T * R, Dv)
    yv = encode_branch(xv, params["v_w"], params["v_b"],
                       params["v_gamma"], params["v_beta"])
    out["spatiotemporal_ft"] = yv.reshape(B, T, R, size)

    # --- audio branch (a_N > 0, args.noW_venc = False) ---
    ya = encode_branch(audio_fts, params["a_w"], params["a_b"],
                       params["a_gamma"], params["a_beta"])
    out["encoded_audio"] = ya
    return out


if __name__ == "__main__":
    # Small shapes (exercise both seq padding and feature->128 padding):
    #   batch=2, video time=3, regions=2, video dim=32, audio seq=7, audio dim=32,
    #   hidden size=32
    B, T, R, Dv = 2, 3, 2, 32
    Sa, Da = 7, 32
    size = 32

    key = jax.random.PRNGKey(0)
    k = jax.random.split(key, 8)

    fts = jax.random.normal(k[0], (B, T, R, Dv), jnp.float32)
    audio_fts = jax.random.normal(k[1], (B, Sa, Da), jnp.float32)

    params = {
        # nn.Linear(Dv, size): weight [size, Dv] -> stored transposed [Dv, size]
        "v_w": (jax.random.normal(k[2], (Dv, size), jnp.float32)
                * (1.0 / math.sqrt(Dv))),
        "v_b": jax.random.normal(k[3], (1, size), jnp.float32) * 0.02,
        "v_gamma": jnp.ones((1, size), jnp.float32),   # LayerNorm a_2
        "v_beta": jnp.zeros((1, size), jnp.float32),   # LayerNorm b_2
        "a_w": (jax.random.normal(k[4], (Da, size), jnp.float32)
                * (1.0 / math.sqrt(Da))),
        "a_b": jax.random.normal(k[5], (1, size), jnp.float32) * 0.02,
        "a_gamma": jnp.ones((1, size), jnp.float32),
        "a_beta": jnp.zeros((1, size), jnp.float32),
    }

    out = jax.block_until_ready(vid_encoder8_forward(fts, audio_fts, params))

    # Correctness check against pure-JAX reference.
    seq_v = T * R
    ref_v = ref_branch(fts.reshape(B * seq_v, Dv), params["v_w"], params["v_b"],
                       jnp.tile(sinusoidal_pe(seq_v, size), (B, 1)),
                       params["v_gamma"], params["v_beta"]).reshape(B, T, R, size)
    ref_a = ref_branch(audio_fts.reshape(B * Sa, Da), params["a_w"], params["a_b"],
                       jnp.tile(sinusoidal_pe(Sa, size), (B, 1)),
                       params["a_gamma"], params["a_beta"]).reshape(B, Sa, size)

    assert out["spatiotemporal_ft"].shape == (B, T, R, size)
    assert out["encoded_audio"].shape == (B, Sa, size)
    # Tolerance allows for the single-pass moments and the EUP approx-reciprocal
    # (+1 Newton step) used inside the kernel; agreement is ~1e-5 in practice.
    assert jnp.allclose(out["spatiotemporal_ft"], ref_v, atol=2e-4, rtol=2e-4)
    assert jnp.allclose(out["encoded_audio"], ref_a, atol=2e-4, rtol=2e-4)

    print("KERNEL_OK")
</pallas_src>

<mosaic_0001>
module attributes {stable_mosaic.version = 11 : i64} {
  func.func @venc_kernel(%arg0: i32, %arg1: i32, %arg2: memref<1x8x32xf32, #tpu.memory_space<vmem>>, %arg3: memref<32x128xf32, #tpu.memory_space<vmem>>, %arg4: memref<1x128xf32, #tpu.memory_space<vmem>>, %arg5: memref<8x128xf32, #tpu.memory_space<vmem>>, %arg6: memref<1x128xf32, #tpu.memory_space<vmem>>, %arg7: memref<1x128xf32, #tpu.memory_space<vmem>>, %arg8: memref<1x8x128xf32, #tpu.memory_space<vmem>>) attributes {dimension_semantics = [#tpu.dimension_semantics<parallel>, #tpu.dimension_semantics<parallel>], iteration_bounds = array<i64: 1, 2>, scalar_prefetch = 0 : i64, scratch_operands = 0 : i64, tpu.core_type = #tpu.core_type<tc>, window_params = [{transform_indices = @transform_0, window_bounds = array<i64: 1, 8, 32>}, {pipeline_mode = #tpu.pipeline_mode<synchronous>, transform_indices = @transform_1, window_bounds = array<i64: 32, 128>}, {pipeline_mode = #tpu.pipeline_mode<synchronous>, transform_indices = @transform_2, window_bounds = array<i64: 1, 128>}, {transform_indices = @transform_3, window_bounds = array<i64: 8, 128>}, {pipeline_mode = #tpu.pipeline_mode<synchronous>, transform_indices = @transform_4, window_bounds = array<i64: 1, 128>}, {pipeline_mode = #tpu.pipeline_mode<synchronous>, transform_indices = @transform_5, window_bounds = array<i64: 1, 128>}, {transform_indices = @transform_6, window_bounds = array<i64: 1, 8, 128>}]} {
    %c0 = arith.constant 0 : index
    %c0_0 = arith.constant 0 : index
    %c0_1 = arith.constant 0 : index
    %0 = vector.load %arg2[%c0, %c0_0, %c0_1] : memref<1x8x32xf32, #tpu.memory_space<vmem>>, vector<1x8x32xf32>
    %1 = vector.shape_cast %0 : vector<1x8x32xf32> to vector<8x32xf32>
    %c0_2 = arith.constant 0 : index
    %c0_3 = arith.constant 0 : index
    %2 = vector.load %arg3[%c0_2, %c0_3] : memref<32x128xf32, #tpu.memory_space<vmem>>, vector<32x128xf32>
    %cst = arith.constant dense<0.000000e+00> : vector<8x128xf32>
    %3 = tpu.matmul %1, %2, %cst {dimension_numbers = #tpu.dot_dimension_numbers<[1], [0], [0], [1], [0, 0, 1, 1], [], []>} : vector<8x32xf32>, vector<32x128xf32>, vector<8x128xf32> -> vector<8x128xf32>
    %c0_4 = arith.constant 0 : index
    %c0_5 = arith.constant 0 : index
    %4 = vector.load %arg4[%c0_4, %c0_5] : memref<1x128xf32, #tpu.memory_space<vmem>>, vector<1x128xf32>
    %5 = vector.broadcast %4 : vector<1x128xf32> to vector<8x128xf32>
    %6 = arith.addf %3, %5 : vector<8x128xf32>
    %cst_6 = arith.constant 0.000000e+00 : f32
    %7 = vector.broadcast %cst_6 : f32 to vector<8x128xf32>
    %8 = arith.maximumf %6, %7 : vector<8x128xf32>
    %c0_7 = arith.constant 0 : index
    %c0_8 = arith.constant 0 : index
    %9 = vector.load %arg5[%c0_7, %c0_8] : memref<8x128xf32, #tpu.memory_space<vmem>>, vector<8x128xf32>
    %10 = arith.addf %8, %9 : vector<8x128xf32>
    %cst_9 = arith.constant dense<0.000000e+00> : vector<8xf32>
    %11 = vector.multi_reduction <add>, %10, %cst_9 [1] : vector<8x128xf32> to vector<8xf32>
    %12 = vector.shape_cast %11 : vector<8xf32> to vector<8x1xf32>
    %13 = arith.mulf %10, %10 : vector<8x128xf32>
    %cst_10 = arith.constant dense<0.000000e+00> : vector<8xf32>
    %14 = vector.multi_reduction <add>, %13, %cst_10 [1] : vector<8x128xf32> to vector<8xf32>
    %15 = vector.shape_cast %14 : vector<8xf32> to vector<8x1xf32>
    %cst_11 = arith.constant 3.125000e-02 : f32
    %16 = vector.broadcast %cst_11 : f32 to vector<8x1xf32>
    %17 = arith.mulf %12, %16 : vector<8x1xf32>
    %18 = arith.mulf %12, %17 : vector<8x1xf32>
    %19 = arith.subf %15, %18 : vector<8x1xf32>
    %cst_12 = arith.constant 0.000000e+00 : f32
    %20 = vector.broadcast %cst_12 : f32 to vector<8x1xf32>
    %21 = arith.maximumf %19, %20 : vector<8x1xf32>
    %cst_13 = arith.constant 0.0322580636 : f32
    %22 = vector.broadcast %cst_13 : f32 to vector<8x1xf32>
    %23 = arith.mulf %21, %22 : vector<8x1xf32>
    %24 = math.sqrt %23 : vector<8x1xf32>
    %cst_14 = arith.constant 9.99999997E-7 : f32
    %25 = vector.broadcast %cst_14 : f32 to vector<8x1xf32>
    %26 = arith.addf %24, %25 : vector<8x1xf32>
    %27 = tpu.reciprocal %26 {approx = true} : vector<8x1xf32> -> vector<8x1xf32>
    %28 = arith.mulf %26, %27 : vector<8x1xf32>
    %cst_15 = arith.constant 2.000000e+00 : f32
    %29 = vector.broadcast %cst_15 : f32 to vector<8x1xf32>
    %30 = arith.subf %29, %28 : vector<8x1xf32>
    %31 = arith.mulf %27, %30 : vector<8x1xf32>
    %c0_16 = arith.constant 0 : index
    %c0_17 = arith.constant 0 : index
    %32 = vector.load %arg6[%c0_16, %c0_17] : memref<1x128xf32, #tpu.memory_space<vmem>>, vector<1x128xf32>
    %33 = vector.broadcast %17 : vector<8x1xf32> to vector<8x128xf32>
    %34 = arith.subf %10, %33 : vector<8x128xf32>
    %35 = vector.broadcast %32 : vector<1x128xf32> to vector<8x128xf32>
    %36 = arith.mulf %35, %34 : vector<8x128xf32>
    %37 = vector.broadcast %31 : vector<8x1xf32> to vector<8x128xf32>
    %38 = arith.mulf %36, %37 : vector<8x128xf32>
    %c0_18 = arith.constant 0 : index
    %c0_19 = arith.constant 0 : index
    %39 = vector.load %arg7[%c0_18, %c0_19] : memref<1x128xf32, #tpu.memory_space<vmem>>, vector<1x128xf32>
    %40 = vector.broadcast %39 : vector<1x128xf32> to vector<8x128xf32>
    %41 = arith.addf %38, %40 : vector<8x128xf32>
    %c0_20 = arith.constant 0 : index
    %c0_21 = arith.constant 0 : index
    %c0_22 = arith.constant 0 : index
    %42 = vector.load %arg8[%c0_20, %c0_21, %c0_22] : memref<1x8x128xf32, #tpu.memory_space<vmem>>, vector<1x8x128xf32>
    %43 = vector.shape_cast %42 : vector<1x8x128xf32> to vector<8x128xf32>
    %44 = vector.shape_cast %41 : vector<8x128xf32> to vector<1x8x128xf32>
    tpu.vector_store %arg8[%c0_20, %c0_21, %c0_22], %44 {strides = array<i32>} : memref<1x8x128xf32, #tpu.memory_space<vmem>>, vector<1x8x128xf32>,
    return
  }
  func.func @transform_0(%arg0: i32, %arg1: i32) -> (i32, i32, i32) {
    %c0_i32 = arith.constant 0 : i32
    %c0_i32_0 = arith.constant 0 : i32
    return %arg1, %arg0, %c0_i32 : i32, i32, i32
  }
  func.func @transform_1(%arg0: i32, %arg1: i32) -> (i32, i32) {
    %c0_i32 = arith.constant 0 : i32
    %c0_i32_0 = arith.constant 0 : i32
    %c0_i32_1 = arith.constant 0 : i32
    return %c0_i32, %c0_i32_0 : i32, i32
  }
  func.func @transform_2(%arg0: i32, %arg1: i32) -> (i32, i32) {
    %c0_i32 = arith.constant 0 : i32
    %c0_i32_0 = arith.constant 0 : i32
    %c0_i32_1 = arith.constant 0 : i32
    return %c0_i32, %c0_i32_0 : i32, i32
  }
  func.func @transform_3(%arg0: i32, %arg1: i32) -> (i32, i32) {
    %c0_i32 = arith.constant 0 : i32
    %c0_i32_0 = arith.constant 0 : i32
    return %arg0, %c0_i32 : i32, i32
  }
  func.func @transform_4(%arg0: i32, %arg1: i32) -> (i32, i32) {
    %c0_i32 = arith.constant 0 : i32
    %c0_i32_0 = arith.constant 0 : i32
    %c0_i32_1 = arith.constant 0 : i32
    return %c0_i32, %c0_i32_0 : i32, i32
  }
  func.func @transform_5(%arg0: i32, %arg1: i32) -> (i32, i32) {
    %c0_i32 = arith.constant 0 : i32
    %c0_i32_0 = arith.constant 0 : i32
    %c0_i32_1 = arith.constant 0 : i32
    return %c0_i32, %c0_i32_0 : i32, i32
  }
  func.func @transform_6(%arg0: i32, %arg1: i32) -> (i32, i32, i32) {
    %c0_i32 = arith.constant 0 : i32
    %c0_i32_0 = arith.constant 0 : i32
    return %arg1, %arg0, %c0_i32 : i32, i32, i32
  }
}

</mosaic_0001>

<llo_original>
// kernel: tpu_custom_call.1
$region0: #{tpu_custom_call.1}
  #allocation0 [shape = 'u32[]', space=smem, size = 0x4, offset = 0x4, fixed_abs, tag = 'smem constant byte address 0x4 - core index']
  #allocation1 [shape = 'u32[144,128]{1,0:T(1,128)}', space=vmem, size = 0x12000, scoped, tag = 'internal scratch']
  %s0 = inlined_call_operand.hbm [shape: f32[2,8,32], index: 0, kind: input, shape index: {}]
  %s1 = inlined_call_operand.hbm [shape: f32[32,128], index: 1, kind: input, shape index: {}]
  %s2 = inlined_call_operand.vmem [shape: f32[1,128], index: 2, kind: input, shape index: {}]
  %s3 = inlined_call_operand.vmem [shape: f32[8,128], index: 3, kind: input, shape index: {}]
  %s4 = inlined_call_operand.vmem [shape: f32[1,128], index: 4, kind: input, shape index: {}]
  %s5 = inlined_call_operand.vmem [shape: f32[1,128], index: 5, kind: input, shape index: {}]
  %s6 = inlined_call_operand.hbm [shape: f32[2,8,128], index: 6, kind: output, shape index: {}]
  %s7 = sld [smem:[#allocation0]]
  $region65: #{tpu_custom_call.1} parent=0
    _
  %s9 = ssub.s32 1, %s7
  %s10 = scalar_select 0, %s9, %s7
  $region1: #{tpu_custom_call.1} parent=0
    #allocation2 [shape = 'u8[8192]{0}', space=vmem, size = 0x2000, scoped, tag = 'input window, operand 0']
    #allocation3 [shape = 's32[2]{0}', space=sflag, size = 0x8, scoped, tag = 'scoped memory for tpu_custom_call.1']
    #allocation4 [shape = 's32[2]{0}', space=sflag, size = 0x8, scoped, tag = 'scoped memory for tpu_custom_call.1']
    #allocation5 [shape = 'u8[16384]{0}', space=vmem, size = 0x4000, scoped, tag = 'input window, operand 1, single buffered']
    #allocation6 [shape = 's32[1]{0}', space=sflag, size = 0x4, scoped, tag = 'scoped memory for tpu_custom_call.1']
    #allocation7 [shape = 'u8[8192]{0}', space=vmem, size = 0x2000, scoped, tag = 'output window, operand 0']
    %11 = vsyncpa [#allocation3], 0
    %s12 = scalar_lea.sflag [#allocation3], 1
    %13 = vsyncpa %s12, 0
    %14 = vsyncpa [#allocation6], 0
    %15 = vsyncpa [#allocation4], 0
    %s16 = scalar_lea.sflag [#allocation4], 1
    %17 = vsyncpa %s16, 0
    loop: start=0, step=1, limit=4
    $region2: #{tpu_custom_call.1} parent=1 // loop_pre_header
      _
    $region3: #{tpu_custom_call.1} parent=1 // loop_header
      %s19 = sphi 0, %s23
      %p20 = scmp.ge.s32.totalorder %s19, 4
      %s26 = sphi 0, %s38
      %s27 = sphi 0, %s34
      %s28 = sphi 0, %s26
      %s29 = sphi 0, %s27
      %s30 = sphi 0, %s28
      %s31 = sphi 0, %s29
      %s43 = sphi 0, %s45
      %s46 = sphi 0, %s43
      %s47 = sphi 0, %s46
      %s63 = sphi 0, %s47
      %s67 = sphi 0, %s67
      %s69 = sphi 0, %s67
      %s70 = sphi 0, %s69
      %s84 = sphi 0, %s70
      %s88 = sphi 0, %s88
      %s90 = sphi 0, %s88
      %s91 = sphi 0, %s90
      %s105 = sphi 0, %s91
      %s111 = sphi 0, %s113
      %s114 = sphi 0, %s111
      %s115 = sphi 0, %s114
      %s131 = sphi 0, %s115
      %s135 = sphi 0, %s135
      %s137 = sphi 0, %s135
      %s138 = sphi 0, %s137
      %s152 = sphi 0, %s138
      %s156 = sphi 0, %s156
      %s158 = sphi 0, %s156
      %s159 = sphi 0, %s158
      %s173 = sphi 0, %s159
      %s181 = sphi 0, %s183
      %s184 = sphi 0, %s181
      %s185 = sphi 0, %s184
      %s201 = sphi 0, %s185
    $region4: #{tpu_custom_call.1} parent=1 // loop_header_branch
      %22 = sbr.rel (%p20) target = $region8
    $region5: #{tpu_custom_call.1} parent=1 // loop_body
      %s24 = ssub.s32 %s19, 1
      %s25 = ssub.s32 %s19, 2
      %s32 = sadd.s32 1, %s27
      %p33 = scmp.ge.s32.totalorder %s32, 2
      %s34 = scalar_select %p33, 0, %s32
      %s35 = sadd.s32 1, %s26
      %s36 = scalar_select %p33, %s35, %s26
      %p37 = scmp.ge.s32.totalorder %s36, 1
      %s38 = scalar_select %p37, 0, %s36
      %s39 = ssub.s32 %s27, %s34
      %s40 = ssub.s32 %s26, %s38
      %s41 = sor.u32 %s39, %s40
      %p42 = scmp.eq.s32.totalorder %s41, 0
      %s44 = sadd.s32 %s43, 1
      %s45 = scalar_select %p42, %s43, %s44
      %p48 = pneg %p42
      %p49 = scmp.eq.s32.totalorder %s19, 1
      %p50 = por %p48, %p49
      %p51 = scmp.ne.s32.totalorder %s43, %s46
      %p52 = scmp.eq.s32.totalorder %s19, 0
      %p53 = por %p51, %p52
      %p54 = scmp.ne.s32.totalorder %s43, %s46
      %p55 = scmp.eq.s32.totalorder %s24, 1
      %p56 = por %p54, %p55
      %p57 = scmp.ne.s32.totalorder %s46, %s47
      %p58 = scmp.eq.s32.totalorder %s24, 0
      %p59 = por %p57, %p58
      %p60 = scmp.ne.s32.totalorder %s46, %s47
      %p61 = scmp.eq.s32.totalorder %s25, 1
      %p62 = por %p60, %p61
      %p64 = scmp.ne.s32.totalorder %s47, %s63
      %p65 = scmp.eq.s32.totalorder %s25, 0
      %p66 = por %p64, %p65
      %s68 = sadd.s32 %s67, 1
      %p71 = scmp.eq.s32.totalorder %s19, 1
      %p72 = scmp.ne.s32.totalorder %s67, %s69
      %p73 = scmp.eq.s32.totalorder %s19, 0
      %p74 = por %p72, %p73
      %p75 = scmp.ne.s32.totalorder %s67, %s69
      %p76 = scmp.eq.s32.totalorder %s24, 1
      %p77 = por %p75, %p76
      %p78 = scmp.ne.s32.totalorder %s69, %s70
      %p79 = scmp.eq.s32.totalorder %s24, 0
      %p80 = por %p78, %p79
      %p81 = scmp.ne.s32.totalorder %s69, %s70
      %p82 = scmp.eq.s32.totalorder %s25, 1
      %p83 = por %p81, %p82
      %p85 = scmp.ne.s32.totalorder %s70, %s84
      %p86 = scmp.eq.s32.totalorder %s25, 0
      %p87 = por %p85, %p86
      %s89 = sadd.s32 %s88, 1
      %p92 = scmp.eq.s32.totalorder %s19, 1
      %p93 = scmp.ne.s32.totalorder %s88, %s90
      %p94 = scmp.eq.s32.totalorder %s19, 0
      %p95 = por %p93, %p94
      %p96 = scmp.ne.s32.totalorder %s88, %s90
      %p97 = scmp.eq.s32.totalorder %s24, 1
      %p98 = por %p96, %p97
      %p99 = scmp.ne.s32.totalorder %s90, %s91
      %p100 = scmp.eq.s32.totalorder %s24, 0
      %p101 = por %p99, %p100
      %p102 = scmp.ne.s32.totalorder %s90, %s91
      %p103 = scmp.eq.s32.totalorder %s25, 1
      %p104 = por %p102, %p103
      %p106 = scmp.ne.s32.totalorder %s91, %s105
      %p107 = scmp.eq.s32.totalorder %s25, 0
      %p108 = por %p106, %p107
      %s109 = ssub.s32 %s26, %s38
      %p110 = scmp.eq.s32.totalorder %s109, 0
      %s112 = sadd.s32 %s111, 1
      %s113 = scalar_select %p110, %s111, %s112
      %p116 = pneg %p110
      %p117 = scmp.eq.s32.totalorder %s19, 1
      %p118 = por %p116, %p117
      %p119 = scmp.ne.s32.totalorder %s111, %s114
      %p120 = scmp.eq.s32.totalorder %s19, 0
      %p121 = por %p119, %p120
      %p122 = scmp.ne.s32.totalorder %s111, %s114
      %p123 = scmp.eq.s32.totalorder %s24, 1
      %p124 = por %p122, %p123
      %p125 = scmp.ne.s32.totalorder %s114, %s115
      %p126 = scmp.eq.s32.totalorder %s24, 0
      %p127 = por %p125, %p126
      %p128 = scmp.ne.s32.totalorder %s114, %s115
      %p129 = scmp.eq.s32.totalorder %s25, 1
      %p130 = por %p128, %p129
      %p132 = scmp.ne.s32.totalorder %s115, %s131
      %p133 = scmp.eq.s32.totalorder %s25, 0
      %p134 = por %p132, %p133
      %s136 = sadd.s32 %s135, 1
      %p139 = scmp.eq.s32.totalorder %s19, 1
      %p140 = scmp.ne.s32.totalorder %s135, %s137
      %p141 = scmp.eq.s32.totalorder %s19, 0
      %p142 = por %p140, %p141
      %p143 = scmp.ne.s32.totalorder %s135, %s137
      %p144 = scmp.eq.s32.totalorder %s24, 1
      %p145 = por %p143, %p144
      %p146 = scmp.ne.s32.totalorder %s137, %s138
      %p147 = scmp.eq.s32.totalorder %s24, 0
      %p148 = por %p146, %p147
      %p149 = scmp.ne.s32.totalorder %s137, %s138
      %p150 = scmp.eq.s32.totalorder %s25, 1
      %p151 = por %p149, %p150
      %p153 = scmp.ne.s32.totalorder %s138, %s152
      %p154 = scmp.eq.s32.totalorder %s25, 0
      %p155 = por %p153, %p154
      %s157 = sadd.s32 %s156, 1
      %p160 = scmp.eq.s32.totalorder %s19, 1
      %p161 = scmp.ne.s32.totalorder %s156, %s158
      %p162 = scmp.eq.s32.totalorder %s19, 0
      %p163 = por %p161, %p162
      %p164 = scmp.ne.s32.totalorder %s156, %s158
      %p165 = scmp.eq.s32.totalorder %s24, 1
      %p166 = por %p164, %p165
      %p167 = scmp.ne.s32.totalorder %s158, %s159
      %p168 = scmp.eq.s32.totalorder %s24, 0
      %p169 = por %p167, %p168
      %p170 = scmp.ne.s32.totalorder %s158, %s159
      %p171 = scmp.eq.s32.totalorder %s25, 1
      %p172 = por %p170, %p171
      %p174 = scmp.ne.s32.totalorder %s159, %s173
      %p175 = scmp.eq.s32.totalorder %s25, 0
      %p176 = por %p174, %p175
      %s177 = ssub.s32 %s27, %s34
      %s178 = ssub.s32 %s26, %s38
      %s179 = sor.u32 %s177, %s178
      %p180 = scmp.eq.s32.totalorder %s179, 0
      %s182 = sadd.s32 %s181, 1
      %s183 = scalar_select %p180, %s181, %s182
      %p186 = pneg %p180
      %p187 = scmp.eq.s32.totalorder %s19, 1
      %p188 = por %p186, %p187
      %p189 = scmp.ne.s32.totalorder %s181, %s184
      %p190 = scmp.eq.s32.totalorder %s19, 0
      %p191 = por %p189, %p190
      %p192 = scmp.ne.s32.totalorder %s181, %s184
      %p193 = scmp.eq.s32.totalorder %s24, 1
      %p194 = por %p192, %p193
      %p195 = scmp.ne.s32.totalorder %s184, %s185
      %p196 = scmp.eq.s32.totalorder %s24, 0
      %p197 = por %p195, %p196
      %p198 = scmp.ne.s32.totalorder %s184, %s185
      %p199 = scmp.eq.s32.totalorder %s25, 1
      %p200 = por %p198, %p199
      %p202 = scmp.ne.s32.totalorder %s185, %s201
      %p203 = scmp.eq.s32.totalorder %s25, 0
      %p204 = por %p202, %p203
      %p205 = scmp.le.s32.totalorder 1, %s19
      %p206 = scmp.lt.s32.totalorder %s19, 3
      %p207 = pnand %p205, %p206
      %p208 = pneg %p207
      // Predicated region
      $region9: #{tpu_custom_call.1} parent=5 // pred_check
        _
      $region10: #{tpu_custom_call.1} parent=5 // pred_check_branch
        %210 = sbr.rel (%p207) target = $region12
      $region11: #{tpu_custom_call.1} parent=5 // pred_region
        %s211 = ssub.s32 %s19, 1
        // Predicated region
        $region13: #{tpu_custom_call.1} parent=11 // pred_check
          %p212 = pneg %p80
        $region14: #{tpu_custom_call.1} parent=11 // pred_check_branch
          %214 = sbr.rel (%p212) target = $region16
        $region15: #{tpu_custom_call.1} parent=11 // pred_region
          %s216 = ssub.s32 512, 512
          %217 = vsyncadd [#allocation6], %s216
          %s218 = sshll.u32 [#allocation5], 4
          %s219 = int_to_ptr.vmem [resolvable:$true] %s218
          %224 = dma.hbm_to_vmem [thread:$0]  %s1, 512, %s219, [#allocation6], 128, 128, 8
        $region16: #{tpu_custom_call.1} parent=11 // pred_fallthru
          _
        // Predicated region
        $region17: #{tpu_custom_call.1} parent=11 // pred_check
          %p225 = pneg %p101
        $region18: #{tpu_custom_call.1} parent=11 // pred_check_branch
          %227 = sbr.rel (%p225) target = $region20
        $region19: #{tpu_custom_call.1} parent=11 // pred_region
          _
        $region20: #{tpu_custom_call.1} parent=11 // pred_fallthru
          _
        // Predicated region
        $region21: #{tpu_custom_call.1} parent=11 // pred_check
          %p228 = pneg %p127
        $region22: #{tpu_custom_call.1} parent=11 // pred_check_branch
          %230 = sbr.rel (%p228) target = $region24
        $region23: #{tpu_custom_call.1} parent=11 // pred_region
          %p231 = scmp.lt.s32.totalorder %s28, 0
          %s232 = scalar_select %p231, %s28, 0
          %s233 = smul.addr %s232, 8
          %s234 = scalar_lea.vmem %s3, %s233
        $region24: #{tpu_custom_call.1} parent=11 // pred_fallthru
          _
        // Predicated region
        $region25: #{tpu_custom_call.1} parent=11 // pred_check
          %p235 = pneg %p148
        $region26: #{tpu_custom_call.1} parent=11 // pred_check_branch
          %237 = sbr.rel (%p235) target = $region28
        $region27: #{tpu_custom_call.1} parent=11 // pred_region
          _
        $region28: #{tpu_custom_call.1} parent=11 // pred_fallthru
          _
        // Predicated region
        $region29: #{tpu_custom_call.1} parent=11 // pred_check
          %p238 = pneg %p169
        $region30: #{tpu_custom_call.1} parent=11 // pred_check_branch
          %240 = sbr.rel (%p238) target = $region32
        $region31: #{tpu_custom_call.1} parent=11 // pred_region
          _
        $region32: #{tpu_custom_call.1} parent=11 // pred_fallthru
          _
      $region12: #{tpu_custom_call.1} parent=5 // pred_fallthru
        _
      %p241 = scmp.lt.s32.totalorder %s19, 2
      // Predicated region
      $region33: #{tpu_custom_call.1} parent=5 // pred_check
        %p242 = pneg %p241
      $region34: #{tpu_custom_call.1} parent=5 // pred_check_branch
        %244 = sbr.rel (%p242) target = $region36
      $region35: #{tpu_custom_call.1} parent=5 // pred_region
        // Predicated region
        $region37: #{tpu_custom_call.1} parent=35 // pred_check
          %p245 = pneg %p53
        $region38: #{tpu_custom_call.1} parent=35 // pred_check_branch
          %247 = sbr.rel (%p245) target = $region40
        $region39: #{tpu_custom_call.1} parent=35 // pred_region
          %s248 = sand.u32 %s43, 1
          %s249 = scalar_lea.sflag [#allocation3], %s248
          %s250 = sand.u32 %s43, 1
          %s251 = smul.addr %s250, 8
          %s252 = scalar_lea.vmem [#allocation2], %s251
          %s254 = ssub.s32 128, 128
          %255 = vsyncadd %s249, %s254
          %s256 = sadd.s32 %s26, %s27
          %s257 = smul.addr %s256, 128
          %s258 = scalar_lea.hbm %s0, %s257
          %s260 = sshll.u32 %s252, 4
          %s261 = int_to_ptr.vmem [resolvable:$true] %s260
          %263 = dma.hbm_to_vmem [thread:$0]  %s258, 128, %s261, %s249
        $region40: #{tpu_custom_call.1} parent=35 // pred_fallthru
          _
      $region36: #{tpu_custom_call.1} parent=5 // pred_fallthru
        _
      %p264 = scmp.le.s32.totalorder 1, %s19
      %p265 = scmp.lt.s32.totalorder %s19, 3
      %p266 = pnand %p264, %p265
      %p267 = pneg %p266
      // Predicated region
      $region41: #{tpu_custom_call.1} parent=5 // pred_check
        _
      $region42: #{tpu_custom_call.1} parent=5 // pred_check_branch
        %269 = sbr.rel (%p266) target = $region44
      $region43: #{tpu_custom_call.1} parent=5 // pred_region
        %s270 = ssub.s32 %s19, 1
        %s271 = sand.u32 %s46, 1
        %s272 = scalar_lea.sflag [#allocation3], %s271
        %s273 = sand.u32 %s46, 1
        %s274 = smul.addr %s273, 8
        %s275 = scalar_lea.vmem [#allocation2], %s274
        // Predicated region
        $region45: #{tpu_custom_call.1} parent=43 // pred_check
          %p276 = pneg %p59
        $region46: #{tpu_custom_call.1} parent=43 // pred_check_branch
          %278 = sbr.rel (%p276) target = $region48
        $region47: #{tpu_custom_call.1} parent=43 // pred_region
          %279 = dma.done %s272, 128
        $region48: #{tpu_custom_call.1} parent=43 // pred_fallthru
          _
        // Predicated region
        $region49: #{tpu_custom_call.1} parent=43 // pred_check
          %p280 = pneg %p80
        $region50: #{tpu_custom_call.1} parent=43 // pred_check_branch
          %282 = sbr.rel (%p280) target = $region52
        $region51: #{tpu_custom_call.1} parent=43 // pred_region
          %283 = dma.done [#allocation6], 512
        $region52: #{tpu_custom_call.1} parent=43 // pred_fallthru
          _
        %s284 = sand.u32 %s46, 1
        %s285 = scalar_lea.sflag [#allocation3], %s284
        %s286 = sand.u32 %s46, 1
        %s287 = smul.addr %s286, 8
        %s288 = scalar_lea.vmem [#allocation2], %s287
        %p289 = pneg %p59
        %p290 = pneg %p56
        %p291 = pneg %p80
        %p292 = pneg %p77
        %p293 = pneg %p101
        %p294 = pneg %p98
        %p295 = scmp.lt.s32.totalorder %s28, 0
        %s296 = scalar_select %p295, %s28, 0
        %s297 = smul.addr %s296, 8
        %s298 = scalar_lea.vmem %s3, %s297
        %p299 = pneg %p127
        %p300 = pneg %p124
        %p301 = pneg %p148
        %p302 = pneg %p145
        %p303 = pneg %p169
        %p304 = pneg %p166
        %p305 = pneg %p197
        %p306 = pneg %p194
        %s307 = sand.u32 %s184, 1
        %s308 = scalar_lea.sflag [#allocation4], %s307
        %s309 = sand.u32 %s184, 1
        %s310 = smul.addr %s309, 8
        %s311 = scalar_lea.vmem [#allocation7], %s310
        %p312 = scmp.lt.s32.totalorder %s28, 0
        %s313 = scalar_select %p312, %s28, 0
        %s314 = smul.addr %s313, 8
        %s315 = scalar_lea.vmem %s3, %s314
        %v316 = vld [vmem:[%s275] sm:$0xff]
        %v317 = vld [vmem:[#allocation5] sm:$0xff]
        %v318 = vld [vmem:[#allocation5 + $0x8] sm:$0xff]
        %v319 = vld [vmem:[#allocation5 + $0x10] sm:$0xff]
        %v320 = vld [vmem:[#allocation5 + $0x18] sm:$0xff]
        %v321 = vld [vmem:[%s2] sm:$0x1]
        %v323 = vlaneseq
        %v324 = vshrl.u32 %v323, 7
        %v325 = vsub.s32 0, %v324
        %v326 = vrot.slane %v321, %v325
        %vm328 = vcmask 261120
        %v330 = vsel %vm328, %v316, 0
        %332 = vmatprep.subr.mxu0 0.0
        %333 = vmatpush1.msra.mxu0 %v317
        %334 = vmatprep.subr.mxu0 0.0
        %335 = vmatpush1.msra.mxu0 %v318
        %336 = vmatprep.subr.mxu0 0.0
        %337 = vmatpush1.msra.mxu0 %v319
        %338 = vmatprep.subr.mxu0 0.0
        %339 = vmatpush1.msra.mxu0 %v320
        %340 = vmatprep.subr.mxu0 0.0
        %341 = vmatpush1.msra.mxu0 0.0
        %342 = vmatprep.subr.mxu0 0.0
        %343 = vmatpush1.msra.mxu0 0.0
        %344 = vmatprep.subr.mxu0 0.0
        %345 = vmatpush1.msra.mxu0 0.0
        %346 = vmatprep.subr.mxu0 0.0
        %347 = vmatpush1.msra.mxu0 0.0
        %348 = vmatprep.subr.mxu0 0.0
        %349 = vmatpush1.msra.mxu0 0.0
        %350 = vmatprep.subr.mxu0 0.0
        %351 = vmatpush1.msra.mxu0 0.0
        %352 = vmatprep.subr.mxu0 0.0
        %353 = vmatpush1.msra.mxu0 0.0
        %354 = vmatprep.subr.mxu0 0.0
        %355 = vmatpush1.msra.mxu0 0.0
        %356 = vmatprep.subr.mxu0 0.0
        %357 = vmatpush1.msra.mxu0 0.0
        %358 = vmatprep.subr.mxu0 0.0
        %359 = vmatpush1.msra.mxu0 0.0
        %360 = vmatprep.subr.mxu0 0.0
        %361 = vmatpush1.msra.mxu0 0.0
        %362 = vmatprep.subr.mxu0 0.0
        %363 = vmatpush1.msra.mxu0 0.0
        %364 = vmatprep.subr.mxu0 0.0
        %365 = vmatpush1.msra.mxu0 0.0
        %366 = vmatprep.subr.mxu0 0.0
        %367 = vmatpush1.msra.mxu0 0.0
        %368 = vmatprep.subr.mxu0 0.0
        %369 = vmatpush1.msra.mxu0 0.0
        %370 = vmatprep.subr.mxu0 0.0
        %371 = vmatpush1.msra.mxu0 0.0
        %372 = vmatprep.subr.mxu0 0.0
        %373 = vmatpush1.msra.mxu0 0.0
        %374 = vmatprep.subr.mxu0 0.0
        %375 = vmatpush1.msra.mxu0 0.0
        %376 = vmatprep.subr.mxu0 0.0
        %377 = vmatpush1.msra.mxu0 0.0
        %378 = vmatprep.subr.mxu0 0.0
        %379 = vmatpush1.msra.mxu0 0.0
        %380 = vmatprep.subr.mxu0 0.0
        %381 = vmatpush1.msra.mxu0 0.0
        %382 = vmatprep.subr.mxu0 0.0
        %383 = vmatpush1.msra.mxu0 0.0
        %384 = vmatprep.subr.mxu0 0.0
        %385 = vmatpush1.msra.mxu0 0.0
        %386 = vmatprep.subr.mxu0 0.0
        %387 = vmatpush1.msra.mxu0 0.0
        %388 = vmatprep.subr.mxu0 0.0
        %389 = vmatpush1.msra.mxu0 0.0
        %390 = vmatprep.subr.mxu0 0.0
        %391 = vmatpush1.msra.mxu0 0.0
        %392 = vmatprep.subr.mxu0 0.0
        %393 = vmatpush1.msra.mxu0 0.0
        %394 = vmatprep.subr.mxu0 0.0
        %395 = vmatpush1.msra.mxu0 0.0
        %396 = vmatprep.mubr.f32.mxu0 0.0
        %397 = vmatmul.mubr.f32.gmra.mrb[0].mxu0 %v330
        %v398 = vpop.f32.mrb[0].mxu0
        %v399 = vadd.f32 %v326, %v398
        %v400 = vpop.f32.mrb[0].mxu0
        %401 = vdwg.mxu0
        %v402 = vmax.f32 %v399, 0.0
        %v403 = vld [vmem:[%s315] sm:$0xff]
        %v404 = vadd.f32 %v402, %v403
        %405 = vadd.xlane.f32.xlu0 %v404
        %v406 = vpop.xlane.xlu0 %405
        %v407 = vmul.f32 %v404, %v404
        %408 = vadd.xlane.f32.xlu0 %v407
        %v409 = vpop.xlane.xlu0 %408
        %v410 = vmul.f32 %v406, 0.03125
        %v411 = vmul.f32 %v406, %v410
        %v412 = vsub.f32 %v409, %v411
        %v413 = vmax.f32 %v412, 0.0
        %v414 = vmul.f32 %v413, 0.032258064
        %v415 = vrsqrt.pop %v414
        %v416 = vmul.f32 %v414, %v415
        %vm417 = vcmp.eq.f32.partialorder %v414, inf
        %v418 = vsel %vm417, %v414, %v416
        %vm419 = vcmp.eq.f32.partialorder %v414, 0.0
        %v420 = vand.u32 %v414, 2147483648
        %v421 = vsel %vm419, %v420, %v418
        %v422 = vadd.f32 %v421, 1e-06
        %v423 = vrcp.pop %v422
        %v424 = vmul.f32 %v422, %v423
        %v425 = vsub.f32 2.0, %v424
        %v426 = vmul.f32 %v423, %v425
        %v427 = vld [vmem:[%s4] sm:$0x1]
        %v428 = vsub.f32 %v404, %v410
        %v430 = vlaneseq
        %v431 = vshrl.u32 %v430, 7
        %v432 = vsub.s32 0, %v431
        %v433 = vrot.slane %v427, %v432
        %v435 = vmul.f32 %v433, %v428
        %v436 = vmul.f32 %v435, %v426
        %v437 = vld [vmem:[%s5] sm:$0x1]
        %v439 = vlaneseq
        %v440 = vshrl.u32 %v439, 7
        %v441 = vsub.s32 0, %v440
        %v442 = vrot.slane %v437, %v441
        %v444 = vadd.f32 %v436, %v442
        %445 = vst [vmem:[%s311] sm:$0xff] %v444
        %s446 = sand.u32 %s184, 1
        %s447 = scalar_lea.sflag [#allocation4], %s446
        %s448 = sand.u32 %s184, 1
        %s449 = smul.addr %s448, 8
        %s450 = scalar_lea.vmem [#allocation7], %s449
        // Predicated region
        $region53: #{tpu_custom_call.1} parent=43 // pred_check
          %p451 = pneg %p194
        $region54: #{tpu_custom_call.1} parent=43 // pred_check_branch
          %453 = sbr.rel (%p451) target = $region56
        $region55: #{tpu_custom_call.1} parent=43 // pred_region
          %s455 = ssub.s32 128, 128
          %456 = vsyncadd %s447, %s455
          %s457 = sadd.s32 %s28, %s29
          %s458 = smul.addr %s457, 128
          %s459 = scalar_lea.hbm %s6, %s458
          %s461 = sshll.u32 %s450, 4
          %s462 = int_to_ptr.vmem [resolvable:$true] %s461
          %464 = dma.vmem_to_hbm [thread:$0]  %s462, 128, %s459, %s447
        $region56: #{tpu_custom_call.1} parent=43 // pred_fallthru
          _
      $region44: #{tpu_custom_call.1} parent=5 // pred_fallthru
        _
      %p465 = scmp.le.s32.totalorder 2, %s19
      // Predicated region
      $region57: #{tpu_custom_call.1} parent=5 // pred_check
        %p466 = pneg %p465
      $region58: #{tpu_custom_call.1} parent=5 // pred_check_branch
        %468 = sbr.rel (%p466) target = $region60
      $region59: #{tpu_custom_call.1} parent=5 // pred_region
        %s469 = ssub.s32 %s19, 2
        // Predicated region
        $region61: #{tpu_custom_call.1} parent=59 // pred_check
          %p470 = pneg %p200
        $region62: #{tpu_custom_call.1} parent=59 // pred_check_branch
          %472 = sbr.rel (%p470) target = $region64
        $region63: #{tpu_custom_call.1} parent=59 // pred_region
          %s473 = sand.u32 %s185, 1
          %s474 = scalar_lea.sflag [#allocation4], %s473
          %s475 = sand.u32 %s185, 1
          %s476 = smul.addr %s475, 8
          %s477 = scalar_lea.vmem [#allocation7], %s476
          %478 = dma.done %s474, 128
        $region64: #{tpu_custom_call.1} parent=59 // pred_fallthru
          _
      $region60: #{tpu_custom_call.1} parent=5 // pred_fallthru
        _
    $region6: #{tpu_custom_call.1} parent=1 // loop_footer
      %s23 = sadd.s32 1, %s19
    $region7: #{tpu_custom_call.1} parent=1 // loop_footer_branch
      %18 = sbr.rel target = $region3
    $region8: #{tpu_custom_call.1} parent=1 // loop_exit
      _
    %479 = vsyncpa [#allocation3], 1
    %s480 = scalar_lea.sflag [#allocation3], 1
    %481 = vsyncpa %s480, 1
    %482 = vsyncpa [#allocation6], 1
    %483 = vsyncpa [#allocation4], 1
    %s484 = scalar_lea.sflag [#allocation4], 1
    %485 = vsyncpa %s484, 1

</llo_original>
